<compile_context>
chip_gen: v6e
topology: v6e:2x2x1
jax: 0.10.0
libtpu: 0.0.40
codegen_flags: <defaults>
</compile_context>

<pallas_src>
import jax
import jax.numpy as jnp
from jax.experimental import pallas as pl
from jax.experimental.pallas import tpu as pltpu


def _dma_identity_kernel(x_hbm, o_hbm, sem):
    # DummyLayerNorm forward: pass-through.  One whole-slab HBM->HBM DMA;
    # nothing ever touches VMEM or the vector units.
    copy = pltpu.make_async_copy(x_hbm, o_hbm, sem)
    copy.start()
    copy.wait()


@jax.jit
def _pallas_identity(x):
    nbytes = x.size * jnp.dtype(x.dtype).itemsize
    return pl.pallas_call(
        _dma_identity_kernel,
        out_shape=jax.ShapeDtypeStruct(x.shape, x.dtype),
        # Raw HBM refs on both sides -> direct HBM->HBM DMA, no auto-tiling.
        in_specs=[pl.BlockSpec(memory_space=pl.ANY)],
        out_specs=pl.BlockSpec(memory_space=pl.ANY),
        scratch_shapes=[pltpu.SemaphoreType.DMA(())],
        compiler_params=pltpu.CompilerParams(
            # Output is produced purely via DMA side effects.
            has_side_effects=True,
        ),
        # Identity copy: read + write the tensor once each, no math.
        cost_estimate=pl.CostEstimate(
            flops=0, transcendentals=0, bytes_accessed=2 * nbytes
        ),
    )(x)


class DummyLayerNorm:
    """JAX/Pallas equivalent of the PyTorch DummyLayerNorm module."""

    def __init__(self, normalized_shape, eps=1e-05, use_pallas=True):
        # Matches the PyTorch module: no parameters are created; both args
        # are intentionally unused by forward.
        self.normalized_shape = normalized_shape
        self.eps = eps
        # use_pallas=False is the production-optimal path: `return x`
        # (zero HBM traffic, zero launch overhead).  Default True so the
        # mandated kernel is actually exercised.
        self.use_pallas = use_pallas

    def __call__(self, x):
        if not self.use_pallas:
            return x  # optimal identity: pure aliasing, no kernel launch
        return _pallas_identity(x)


if __name__ == "__main__":
    key = jax.random.PRNGKey(0)
    # Same shape as the PyTorch example: torch.rand(2, 3, 768)
    x = jax.random.uniform(key, (2, 3, 768), dtype=jnp.float32)

    layer = DummyLayerNorm(normalized_shape=768)
    y = layer(x)
    y = jax.block_until_ready(y)

    # Forward is identity: output must equal input exactly.
    assert y.shape == x.shape
    assert y.dtype == x.dtype
    assert bool(jnp.all(y == x))

    print("KERNEL_OK")
</pallas_src>

<mosaic_0001>
module attributes {stable_mosaic.version = 11 : i64} {
  func.func @_dma_identity_kernel(%arg0: memref<2x3x768xf32, #tpu.memory_space<any>>, %arg1: memref<2x3x768xf32, #tpu.memory_space<any>>, %arg2: memref<!tpu.dma_semaphore, #tpu.memory_space<semaphore_mem>>) attributes {dimension_semantics = [], scalar_prefetch = 0 : i64, scratch_operands = 1 : i64, tpu.core_type = #tpu.core_type<tc>} {
    tpu.enqueue_dma source(%arg0 : memref<2x3x768xf32, #tpu.memory_space<any>>) target(%arg1 : memref<2x3x768xf32, #tpu.memory_space<any>>) target_semaphore(%arg2 : memref<!tpu.dma_semaphore, #tpu.memory_space<semaphore_mem>>)
    tpu.wait_dma2 semaphore(%arg2 : memref<!tpu.dma_semaphore, #tpu.memory_space<semaphore_mem>>) src(%arg0 : memref<2x3x768xf32, #tpu.memory_space<any>>) dst(%arg1 : memref<2x3x768xf32, #tpu.memory_space<any>>)
    return
  }
}

</mosaic_0001>

<llo_original>
// kernel: _pallas_identity.1
$region0: #{_pallas_identity.1}
  #allocation0 [shape = 'u32[]', space=smem, size = 0x4, offset = 0x4, fixed_abs, tag = 'smem constant byte address 0x4 - core index']
  #allocation1 [shape = 'u32[144,128]{1,0:T(1,128)}', space=vmem, size = 0x12000, scoped, tag = 'internal scratch']
  #allocation2 [shape = 's32[1]{0}', space=sflag, size = 0x4, scoped, tag = 'scratch operand']
  #allocation3 [shape = 's32[]', space=sflag, size = 0x4, offset = 0, fixed_abs, tag = 'sflag constant byte address 0x0 - dummy sync flag']
  %s0 = inlined_call_operand.vmem [shape: f32[2,3,768], index: 0, kind: input, shape index: {}]
  %s1 = inlined_call_operand.vmem [shape: f32[2,3,768], index: 1, kind: output, shape index: {}]
  %s2 = sld [smem:[#allocation0]]
  $region36: #{_pallas_identity.1} parent=0
    _
  %s4 = ssub.s32 1, %s2
  %s5 = scalar_select 0, %s4, %s2
  %p7 = scmp.lt.u32.totalorder 48, 8
  %p8 = pneg %p7
  // Predicated region
  $region2: #{_pallas_identity.1} parent=0 // pred_check
    _
  $region3: #{_pallas_identity.1} parent=0 // pred_check_branch
    %10 = sbr.rel (%p7) target = $region5
  $region4: #{_pallas_identity.1} parent=0 // pred_region
    %s26 = sand.u32 48, 7
    %p27 = scmp.eq.s32.totalorder %s26, 0
    // Predicated region
    $region17: #{_pallas_identity.1} parent=4 // pred_check
      %p28 = pneg %p27
    $region18: #{_pallas_identity.1} parent=4 // pred_check_branch
      %30 = sbr.rel (%p28) target = $region20
    $region19: #{_pallas_identity.1} parent=4 // pred_region
      loop: start=0, step=1, limit=1
      $region21: #{_pallas_identity.1} parent=19 // loop_pre_header
        _
      $region22: #{_pallas_identity.1} parent=19 // loop_header
        %s32 = sphi 0, %s36
        %p33 = scmp.ge.s32.totalorder %s32, 1
        %s37 = sphi %s0, %s0
        %s38 = sphi %s1, %s1
      $region23: #{_pallas_identity.1} parent=19 // loop_header_branch
        %35 = sbr.rel (%p33) target = $region27
      $region24: #{_pallas_identity.1} parent=19 // loop_body
        %v39 = vld [vmem:[%s37] sm:$0xff]
        %40 = vst [vmem:[%s38] sm:$0xff] %v39
        %v41 = vld [vmem:[%s37 + $0x8] sm:$0xff]
        %42 = vst [vmem:[%s38 + $0x8] sm:$0xff] %v41
        %v43 = vld [vmem:[%s37 + $0x10] sm:$0xff]
        %44 = vst [vmem:[%s38 + $0x10] sm:$0xff] %v43
        %v45 = vld [vmem:[%s37 + $0x18] sm:$0xff]
        %46 = vst [vmem:[%s38 + $0x18] sm:$0xff] %v45
        %v47 = vld [vmem:[%s37 + $0x20] sm:$0xff]
        %48 = vst [vmem:[%s38 + $0x20] sm:$0xff] %v47
        %v49 = vld [vmem:[%s37 + $0x28] sm:$0xff]
        %50 = vst [vmem:[%s38 + $0x28] sm:$0xff] %v49
      $region25: #{_pallas_identity.1} parent=19 // loop_footer
        %s36 = sadd.s32 1, %s32
      $region26: #{_pallas_identity.1} parent=19 // loop_footer_branch
        %31 = sbr.rel target = $region22
      $region27: #{_pallas_identity.1} parent=19 // loop_exit
        _
    $region20: #{_pallas_identity.1} parent=4 // pred_fallthru
      _
    %p51 = pneg %p27
    // Predicated region
    $region28: #{_pallas_identity.1} parent=4 // pred_check
      _
    $region29: #{_pallas_identity.1} parent=4 // pred_check_branch
      %53 = sbr.rel (%p27) target = $region31
    $region30: #{_pallas_identity.1} parent=4 // pred_region
      %s54 = sand.u32 48, 7
    $region31: #{_pallas_identity.1} parent=4 // pred_fallthru
      _
  $region5: #{_pallas_identity.1} parent=0 // pred_fallthru
    _
  // Predicated region
  $region6: #{_pallas_identity.1} parent=0 // pred_check
    %p11 = pneg %p7
  $region7: #{_pallas_identity.1} parent=0 // pred_check_branch
    %13 = sbr.rel (%p11) target = $region9
  $region8: #{_pallas_identity.1} parent=0 // pred_region
    %s14 = sshll.u32 1, 48
    %s15 = ssub.s32 %s14, 1
    loop: start=0, step=1, limit=1
    $region10: #{_pallas_identity.1} parent=8 // loop_pre_header
      _
    $region11: #{_pallas_identity.1} parent=8 // loop_header
      %s17 = sphi 0, %s21
      %p18 = scmp.ge.s32.totalorder %s17, 1
      %s22 = sphi %s0, %s0
      %s23 = sphi %s1, %s1
    $region12: #{_pallas_identity.1} parent=8 // loop_header_branch
      %20 = sbr.rel (%p18) target = $region16
    $region13: #{_pallas_identity.1} parent=8 // loop_body
      %v24 = vld [vmem:[%s22] sm:%s15]
      %25 = vst [vmem:[%s23] sm:%s15] %v24
    $region14: #{_pallas_identity.1} parent=8 // loop_footer
      %s21 = sadd.s32 1, %s17
    $region15: #{_pallas_identity.1} parent=8 // loop_footer_branch
      %16 = sbr.rel target = $region11
    $region16: #{_pallas_identity.1} parent=8 // loop_exit
      _
  $region9: #{_pallas_identity.1} parent=0 // pred_fallthru
    _
  // Predicated region
  $region32: #{_pallas_identity.1} parent=0 // pred_check
    _
  $region33: #{_pallas_identity.1} parent=0 // pred_check_branch
    %57 = sbr.rel (0) target = $region35
  $region34: #{_pallas_identity.1} parent=0 // pred_region
    %58 = vsyncadd [#allocation2], 768
  $region35: #{_pallas_identity.1} parent=0 // pred_fallthru
    _
  %s59 = smul.u32 4, 2
  %s60 = smul.u32 %s59, 1
  %s61 = smul.u32 %s60, 6
  %s62 = sshll.u32 %s61, 4
  %63 = dma.done [#allocation2], %s62
  %64 = vsyncmov [#allocation2]
  %s65 = vpop.sfrf %64
  %p66 = scmp.eq.s32.totalorder %s65, 0
  %p67 = pneg %p66
  %69 = shalt.err (%p67)

</llo_original>
